<compile_context>
chip_gen: v7x
topology: tpu7x:2x2x1
jax: 0.10.0
libtpu: 0.0.40
codegen_flags: <defaults>
</compile_context>

<pallas_src>
import jax
import jax.numpy as jnp
from jax.experimental import pallas as pl
from jax.experimental.pallas import tpu as pltpu

IN_FEATURES = 220
OUT_FEATURES = 1
TM_MAX = 4096          # ~12-13 MiB double-buffered VMEM at f32; safe on v5e/v6e/v7x


def _round_up(n: int, m: int) -> int:
    return ((n + m - 1) // m) * m


def linear_kernel(x_ref, w_ref, b_ref, o_ref):
    x = x_ref[...]                       # (TM, 220) f32, fresh batch tile each grid step
    w = w_ref[...]                       # (1, 220) f32, VMEM-resident (constant index_map)
    b = b_ref[0]                         # scalar bias from SMEM
    # VPU multiply + XLU lane reduce; MXU would use <1% of its columns for N=1.
    y = jnp.sum(x * w, axis=-1, keepdims=True) + b   # (TM, 1) f32
    o_ref[...] = y.astype(o_ref.dtype)


def _choose_tile(B: int, tm_max: int = TM_MAX) -> int:
    """Pick the batch tile: big (amortize per-step overhead), >=2 tiles when
    B is large enough (so the parallel axis can use both v7x TensorCores)."""
    if B > tm_max:
        return tm_max
    if B > 1024:
        # Split into two tiles so grid >= 2; each half still >512 rows.
        return _round_up((B + 1) // 2, 8)
    return _round_up(B, 8)


def linear_forward(x, w, b, tm: int | None = None):
    """x: (B, 220) f32, w: (1, 220) f32 (PyTorch (out,in) layout), b: (1,) f32 -> (B, 1) f32."""
    B = x.shape[0]
    if tm is None:
        tm = _choose_tile(B)
    grid = (pl.cdiv(B, tm),)             # ragged last block handled by Pallas; no jnp.pad

    bytes_accessed = B * (IN_FEATURES + OUT_FEATURES) * 4 + (IN_FEATURES + 1) * 4

    return pl.pallas_call(
        linear_kernel,
        out_shape=jax.ShapeDtypeStruct((B, OUT_FEATURES), jnp.float32),
        grid_spec=pl.GridSpec(
            grid=grid,
            in_specs=[
                # x: one batch tile per grid step (double-buffered by the pipeline).
                pl.BlockSpec((tm, IN_FEATURES), lambda i: (i, 0)),
                # weight row: constant index map -> stays resident in VMEM.
                pl.BlockSpec((OUT_FEATURES, IN_FEATURES), lambda i: (0, 0)),
                # bias: scalar in SMEM (no padded (8,128) VMEM tile).
                pl.BlockSpec(memory_space=pltpu.MemorySpace.SMEM),
            ],
            out_specs=pl.BlockSpec((tm, OUT_FEATURES), lambda i: (i, 0)),
        ),
        compiler_params=pltpu.CompilerParams(
            # Independent batch tiles -> shard across TCs on v7x megacore.
            dimension_semantics=("parallel",),
            # Headroom for the bigger tiles (v5e scoped default is only 16 MiB;
            # the (tm,1) output buffer lane-pads to (tm,128) in VMEM).
            vmem_limit_bytes=32 * 1024 * 1024,
        ),
        cost_estimate=pl.CostEstimate(
            flops=2 * B * IN_FEATURES,
            transcendentals=0,
            bytes_accessed=bytes_accessed,
        ),
    )(x, w, b)


def init_params(key):
    # Deterministic init mimicking nn.Linear's uniform(-1/sqrt(fan_in), +1/sqrt(fan_in)).
    kw, kb = jax.random.split(key)
    bound = 1.0 / jnp.sqrt(float(IN_FEATURES))
    w = jax.random.uniform(kw, (OUT_FEATURES, IN_FEATURES), jnp.float32,
                           minval=-bound, maxval=bound)   # PyTorch layout (out, in)
    b = jax.random.uniform(kb, (OUT_FEATURES,), jnp.float32,
                           minval=-bound, maxval=bound)
    return w, b


if __name__ == "__main__":
    key = jax.random.PRNGKey(0)
    kx, kx2, kp = jax.random.split(key, 3)

    w, b = init_params(kp)   # w: (1, 220), b: (1,)

    # 1) Small smoke test (single tile).
    B = 8
    x = jax.random.normal(kx, (B, IN_FEATURES), jnp.float32)
    out = jax.block_until_ready(linear_forward(x, w, b))
    ref = x @ w.T + b
    assert out.shape == (B, OUT_FEATURES)
    assert jnp.allclose(out, ref, atol=1e-5, rtol=1e-4)

    # 2) Ragged multi-tile check: exercises the no-pad grid (last block partial)
    #    and the multi-step "parallel" batch axis.
    B2 = 1300
    x2 = jax.random.normal(kx2, (B2, IN_FEATURES), jnp.float32)
    out2 = jax.block_until_ready(linear_forward(x2, w, b, tm=512))  # grid=(3,), last block ragged
    ref2 = x2 @ w.T + b
    assert out2.shape == (B2, OUT_FEATURES)
    assert jnp.allclose(out2, ref2, atol=1e-5, rtol=1e-4)

    print("KERNEL_OK")
</pallas_src>

<mosaic_0001>
module attributes {stable_mosaic.version = 11 : i64} {
  func.func @linear_kernel(%arg0: i32, %arg1: memref<8x220xf32, #tpu.memory_space<vmem>>, %arg2: memref<1x220xf32, #tpu.memory_space<vmem>>, %arg3: memref<1xf32, #tpu.memory_space<smem>>, %arg4: memref<8x1xf32, #tpu.memory_space<vmem>>) attributes {dimension_semantics = [#tpu.dimension_semantics<parallel>], iteration_bounds = array<i64: 1>, scalar_prefetch = 0 : i64, scratch_operands = 0 : i64, tpu.core_type = #tpu.core_type<tc>, window_params = [{transform_indices = @transform_0, window_bounds = array<i64: 8, 220>}, {pipeline_mode = #tpu.pipeline_mode<synchronous>, transform_indices = @transform_1, window_bounds = array<i64: 1, 220>}, {transform_indices = @transform_2, window_bounds = array<i64: 1>}, {transform_indices = @transform_3, window_bounds = array<i64: 8, 1>}]} {
    %c0 = arith.constant 0 : index
    %c0_0 = arith.constant 0 : index
    %0 = vector.load %arg1[%c0, %c0_0] : memref<8x220xf32, #tpu.memory_space<vmem>>, vector<8x220xf32>
    %c0_1 = arith.constant 0 : index
    %c0_2 = arith.constant 0 : index
    %1 = vector.load %arg2[%c0_1, %c0_2] : memref<1x220xf32, #tpu.memory_space<vmem>>, vector<1x220xf32>
    %c0_3 = arith.constant 0 : index
    %2 = memref.load %arg3[%c0_3] : memref<1xf32, #tpu.memory_space<smem>>
    %3 = vector.broadcast %1 : vector<1x220xf32> to vector<8x220xf32>
    %4 = arith.mulf %0, %3 : vector<8x220xf32>
    %cst = arith.constant dense<0.000000e+00> : vector<8xf32>
    %5 = vector.multi_reduction <add>, %4, %cst [1] : vector<8x220xf32> to vector<8xf32>
    %6 = vector.shape_cast %5 : vector<8xf32> to vector<8x1xf32>
    %7 = vector.broadcast %2 : f32 to vector<8x1xf32>
    %8 = arith.addf %6, %7 : vector<8x1xf32>
    %c0_4 = arith.constant 0 : index
    %c0_5 = arith.constant 0 : index
    %9 = vector.load %arg4[%c0_4, %c0_5] : memref<8x1xf32, #tpu.memory_space<vmem>>, vector<8x1xf32>
    tpu.vector_store %arg4[%c0_4, %c0_5], %8 {strides = array<i32>} : memref<8x1xf32, #tpu.memory_space<vmem>>, vector<8x1xf32>,
    return
  }
  func.func @transform_0(%arg0: i32) -> (i32, i32) {
    %c0_i32 = arith.constant 0 : i32
    %c0_i32_0 = arith.constant 0 : i32
    return %arg0, %c0_i32 : i32, i32
  }
  func.func @transform_1(%arg0: i32) -> (i32, i32) {
    %c0_i32 = arith.constant 0 : i32
    %c0_i32_0 = arith.constant 0 : i32
    %c0_i32_1 = arith.constant 0 : i32
    return %c0_i32, %c0_i32_0 : i32, i32
  }
  func.func @transform_2(%arg0: i32) -> i32 {
    %c0_i32 = arith.constant 0 : i32
    %c0_i32_0 = arith.constant 0 : i32
    return %c0_i32 : i32
  }
  func.func @transform_3(%arg0: i32) -> (i32, i32) {
    %c0_i32 = arith.constant 0 : i32
    %c0_i32_0 = arith.constant 0 : i32
    return %arg0, %c0_i32 : i32, i32
  }
}

</mosaic_0001>

<llo_original>
// kernel: tpu_custom_call.1
$region0: #{tpu_custom_call.1}
  #allocation0 [shape = 'u32[]', space=smem, size = 0x4, offset = 0x4, fixed_abs, tag = 'smem constant byte address 0x4 - core index']
  #allocation1 [shape = 'u32[144,128]{1,0:T(1,128)}', space=vmem, size = 0x12000, scoped, tag = 'internal scratch']
  #allocation2 [shape = 'f32[1]{0:T(128)S(6)}', space=smem, size = 0x200, scoped, tag = 'scoped memory for tpu_custom_call.1']
  %s0 = inlined_call_operand.hbm [shape: f32[8,220], index: 0, kind: input, shape index: {}]
  %s1 = inlined_call_operand.vmem [shape: f32[1,220], index: 1, kind: input, shape index: {}]
  %s2 = inlined_call_operand.<no memory space> [shape: f32[1], index: 2, kind: input, shape index: {}]
  %s3 = inlined_call_operand.vmem [shape: f32[8,1], index: 3, kind: output, shape index: {}]
  %s4 = sld [smem:[#allocation0]]
  $region26: #{tpu_custom_call.1} parent=0
    _
  %s6 = ssub.s32 1, %s4
  %s7 = scalar_select 0, %s6, %s4
  %8 = sst [smem:[#allocation2]] %s2
  $region1: #{tpu_custom_call.1} parent=0
    #allocation3 [shape = 'u8[8192]{0}', space=vmem, size = 0x2000, scoped, tag = 'input window, operand 0, single buffered']
    #allocation4 [shape = 's32[1]{0}', space=sflag, size = 0x4, scoped, tag = 'scoped memory for tpu_custom_call.1']
    %9 = vsyncpa [#allocation4], 0
    // Predicated region
    $region2: #{tpu_custom_call.1} parent=1 // pred_check
      _
    $region3: #{tpu_custom_call.1} parent=1 // pred_check_branch
      %11 = sbr.rel (0) target = $region5
    $region4: #{tpu_custom_call.1} parent=1 // pred_region
      %s13 = ssub.s32 256, 256
      %14 = vsyncadd [#allocation4], %s13
      %s16 = sshll.u32 [#allocation3], 4
      %s17 = int_to_ptr.vmem [resolvable:$true] %s16
      %19 = dma.hbm_to_vmem [thread:$0]  %s0, 256, %s17, [#allocation4]
    $region5: #{tpu_custom_call.1} parent=1 // pred_fallthru
      _
    // Predicated region
    $region6: #{tpu_custom_call.1} parent=1 // pred_check
      _
    $region7: #{tpu_custom_call.1} parent=1 // pred_check_branch
      %21 = sbr.rel (0) target = $region9
    $region8: #{tpu_custom_call.1} parent=1 // pred_region
      _
    $region9: #{tpu_custom_call.1} parent=1 // pred_fallthru
      _
    // Predicated region
    $region10: #{tpu_custom_call.1} parent=1 // pred_check
      _
    $region11: #{tpu_custom_call.1} parent=1 // pred_check_branch
      %23 = sbr.rel (0) target = $region13
    $region12: #{tpu_custom_call.1} parent=1 // pred_region
      _
    $region13: #{tpu_custom_call.1} parent=1 // pred_fallthru
      _
    // Predicated region
    $region14: #{tpu_custom_call.1} parent=1 // pred_check
      _
    $region15: #{tpu_custom_call.1} parent=1 // pred_check_branch
      %25 = sbr.rel (0) target = $region17
    $region16: #{tpu_custom_call.1} parent=1 // pred_region
      %26 = dma.done [#allocation4], 256
    $region17: #{tpu_custom_call.1} parent=1 // pred_fallthru
      _
    %v27 = vld [vmem:[#allocation3] sm:$0xff]
    %v28 = vld [vmem:[#allocation3 + $0x8] sm:$0xff]
    %v29 = vld [vmem:[%s1] sm:$0x3]
    %s30 = sld [smem:[#allocation2]]
    %v32 = vlaneseq
    %v33 = vshrl.u32 %v32, 7
    %v34 = vsub.s32 0, %v33
    %v35 = vrot.slane %v29, %v34
    %v36 = vlaneseq
    %v37 = vshrl.u32 %v36, 7
    %v38 = vsub.s32 1, %v37
    %v39 = vrot.slane %v29, %v38
    %v42 = vmul.f32 %v27, %v35
    %v43 = vmul.f32 %v28, %v39
    %vm44 = vcmask 752640
    %v45 = vsel %vm44, %v43, 0.0
    %v46 = vadd.f32 %v42, %v45
    %47 = vadd.xlane.f32.xlu0 %v46
    %v48 = vpop.xlane.xlu0 %47
    %v49 = vstv %s30
    %v50 = vadd.f32 %v48, %v49
    %vm51 = vcmask 7168
    %52 = vst.msk [vmem:[%s3] sm:$0xff] %vm51, %v50
    // Predicated region
    $region18: #{tpu_custom_call.1} parent=1 // pred_check
      _
    $region19: #{tpu_custom_call.1} parent=1 // pred_check_branch
      %54 = sbr.rel (0) target = $region21
    $region20: #{tpu_custom_call.1} parent=1 // pred_region
      _
    $region21: #{tpu_custom_call.1} parent=1 // pred_fallthru
      _
    // Predicated region
    $region22: #{tpu_custom_call.1} parent=1 // pred_check
      _
    $region23: #{tpu_custom_call.1} parent=1 // pred_check_branch
      %56 = sbr.rel (0) target = $region25
    $region24: #{tpu_custom_call.1} parent=1 // pred_region
      _
    $region25: #{tpu_custom_call.1} parent=1 // pred_fallthru
      _
    %57 = vsyncpa [#allocation4], 1

</llo_original>
